<compile_context>
chip_gen: v7x
topology: tpu7x:2x2x1
jax: 0.10.0
libtpu: 0.0.40
codegen_flags: <defaults>
</compile_context>

<pallas_src>
import math

import jax
import jax.numpy as jnp
from jax.experimental import pallas as pl
from jax.experimental.pallas import tpu as pltpu


def _round_up(x: int, m: int) -> int:
    return (x + m - 1) // m * m


def _make_aggregate_kernel(num_layers: int, function):
    """Kernel body: `num_layers` linears aggregated pairwise with `function`."""

    def kernel(x_ref, w_ref, b_ref, o_ref, acc_ref):
        k = pl.program_id(2)

        # ---- init: zero all per-layer f32 accumulators -----------------
        @pl.when(k == 0)
        def _():
            acc_ref[...] = jnp.zeros_like(acc_ref)

        # ---- accumulate this K-slab for every layer (unrolled, L small) --
        x = x_ref[...]
        for l in range(num_layers):
            acc_ref[l, :, :] += jnp.dot(
                x, w_ref[l, :, :], preferred_element_type=jnp.float32
            )

        # ---- finalize: bias add (f32), pairwise aggregate, downcast -----
        @pl.when(k == pl.num_programs(2) - 1)
        def _():
            b_f32 = b_ref[...].astype(jnp.float32)  # (L, tn)
            res = acc_ref[0, :, :] + b_f32[0:1, :]
            for l in range(1, num_layers):
                y_l = acc_ref[l, :, :] + b_f32[l : l + 1, :]
                res = function(res, y_l)
            o_ref[...] = res.astype(o_ref.dtype)

    return kernel


def aggregate_linear(
    x,
    weights,   # (L, dinp, dout)
    biases,    # (L, dout)
    function=jnp.add,
    *,
    tm: int = 256,
    tn: int = 256,
    tk: int = 512,
):
    """Aggregate(function, Linear_0, ..., Linear_{L-1})(x) as one fused
    Pallas TPU kernel.  `function` must be an elementwise binary op."""
    *lead, dinp = x.shape
    L, w_dinp, dout = weights.shape
    assert w_dinp == dinp and biases.shape == (L, dout)

    M = math.prod(lead) if lead else 1
    x2 = x.reshape(M, dinp)

    # Tile sizes: lane-dense (multiple of 128) on N/K, sublane-aligned on M,
    # clamped so tiny shapes give a (1,1,1) grid instead of huge padding.
    sub = 8 if x.dtype == jnp.float32 else 16
    tm = min(tm, _round_up(M, sub))
    tn = min(tn, _round_up(dout, 128))
    tk = min(tk, _round_up(dinp, 128))

    # Pad once in HBM so every grid step runs the fast unmasked path.
    Mp = _round_up(M, tm)
    Kp = _round_up(dinp, tk)
    Np = _round_up(dout, tn)
    x_p = jnp.pad(x2, ((0, Mp - M), (0, Kp - dinp)))
    w_p = jnp.pad(weights, ((0, 0), (0, Kp - dinp), (0, Np - dout)))
    b_p = jnp.pad(biases, ((0, 0), (0, Np - dout)))

    grid = (Mp // tm, Np // tn, Kp // tk)
    kernel = _make_aggregate_kernel(L, function)

    flops = 2 * L * Mp * Kp * Np
    bytes_accessed = (
        x_p.size * x_p.dtype.itemsize
        + w_p.size * w_p.dtype.itemsize
        + b_p.size * b_p.dtype.itemsize
        + Mp * Np * x.dtype.itemsize
    )

    out_p = pl.pallas_call(
        kernel,
        out_shape=jax.ShapeDtypeStruct((Mp, Np), x.dtype),
        grid_spec=pltpu.PrefetchScalarGridSpec(
            num_scalar_prefetch=0,
            grid=grid,
            in_specs=[
                # x tile: (tm, tk), indexed by (i, k)
                pl.BlockSpec((tm, tk), lambda i, j, k: (i, k)),
                # stacked weights: (L, tk, tn), indexed by (k, j)
                pl.BlockSpec((L, tk, tn), lambda i, j, k: (0, k, j)),
                # stacked biases: (L, tn), indexed by j only
                pl.BlockSpec((L, tn), lambda i, j, k: (0, j)),
            ],
            out_specs=pl.BlockSpec((tm, tn), lambda i, j, k: (i, j)),
            scratch_shapes=[pltpu.VMEM((L, tm, tn), jnp.float32)],
        ),
        compiler_params=pltpu.CompilerParams(
            dimension_semantics=("parallel", "parallel", "arbitrary"),
        ),
        cost_estimate=pl.CostEstimate(
            flops=flops, transcendentals=0, bytes_accessed=bytes_accessed
        ),
    )(x_p, w_p, b_p)

    out = out_p[:M, :dout]
    return out.reshape(*lead, dout)


def _reference(x, weights, biases, function=jnp.add):
    L = weights.shape[0]
    outs = [
        jnp.einsum(
            "...d,df->...f", x, weights[l], precision=jax.lax.Precision.HIGHEST
        )
        + biases[l]
        for l in range(L)
    ]
    res = outs[0]
    for o in outs[1:]:
        res = function(res, o)
    return res


if __name__ == "__main__":
    key = jax.random.PRNGKey(0)
    k1, k2, k3, k4, k5, k6 = jax.random.split(key, 6)

    # ---- small case: Aggregate(add, Linear(32->64), Linear(32->64)) ------
    batch, seq, dinp, dout, L = 2, 8, 32, 64, 2
    x = jax.random.normal(k1, (batch, seq, dinp), dtype=jnp.float32)
    w = jax.random.normal(k2, (L, dinp, dout), dtype=jnp.float32) / jnp.sqrt(dinp)
    b = jax.random.normal(k3, (L, dout), dtype=jnp.float32)

    out = jax.block_until_ready(aggregate_linear(x, w, b, function=jnp.add))
    ref = _reference(x, w, b, function=jnp.add)
    assert out.shape == (batch, seq, dout), "small case shape mismatch"
    assert jnp.allclose(out, ref, rtol=1e-2, atol=1e-2), "small case mismatch"

    # ---- larger case: exercises multi-step M / N / K grid axes -----------
    M2, K2, N2 = 512, 1024, 256
    x2 = jax.random.normal(k4, (M2, K2), dtype=jnp.float32)
    w2 = jax.random.normal(k5, (L, K2, N2), dtype=jnp.float32) / jnp.sqrt(K2)
    b2 = jax.random.normal(k6, (L, N2), dtype=jnp.float32)
    out2 = jax.block_until_ready(aggregate_linear(x2, w2, b2, function=jnp.add))
    ref2 = _reference(x2, w2, b2, function=jnp.add)
    assert out2.shape == (M2, N2), "large case shape mismatch"
    assert jnp.allclose(out2, ref2, rtol=1e-2, atol=1e-2), "large case mismatch"

    # ---- non-add aggregation function (elementwise maximum) --------------
    out3 = jax.block_until_ready(aggregate_linear(x, w, b, function=jnp.maximum))
    ref3 = _reference(x, w, b, function=jnp.maximum)
    assert jnp.allclose(out3, ref3, rtol=1e-2, atol=1e-2), "maximum case mismatch"

    print("KERNEL_OK")
</pallas_src>

<mosaic_0001>
module attributes {stable_mosaic.version = 11 : i64} {
  func.func @kernel(%arg0: i32, %arg1: i32, %arg2: i32, %arg3: memref<16x128xf32, #tpu.memory_space<vmem>>, %arg4: memref<2x128x128xf32, #tpu.memory_space<vmem>>, %arg5: memref<2x128xf32, #tpu.memory_space<vmem>>, %arg6: memref<16x128xf32, #tpu.memory_space<vmem>>, %arg7: memref<2x16x128xf32, #tpu.memory_space<vmem>>) attributes {dimension_semantics = [#tpu.dimension_semantics<parallel>, #tpu.dimension_semantics<parallel>, #tpu.dimension_semantics<arbitrary>], iteration_bounds = array<i64: 1, 1, 1>, scalar_prefetch = 0 : i64, scratch_operands = 1 : i64, tpu.core_type = #tpu.core_type<tc>, window_params = [{transform_indices = @transform_0, window_bounds = array<i64: 16, 128>}, {transform_indices = @transform_1, window_bounds = array<i64: 2, 128, 128>}, {transform_indices = @transform_2, window_bounds = array<i64: 2, 128>}, {transform_indices = @transform_3, window_bounds = array<i64: 16, 128>}]} {
    %c0_i32 = arith.constant 0 : i32
    %0 = arith.cmpi eq, %arg2, %c0_i32 : i32
    %1 = arith.extui %0 : i1 to i32
    %c0_i32_0 = arith.constant 0 : i32
    %2 = arith.cmpi ne, %1, %c0_i32_0 : i32
    scf.if %2 {
      %cst_22 = arith.constant 0.000000e+00 : f32
      %25 = vector.broadcast %cst_22 : f32 to vector<2x16x128xf32>
      %c0_23 = arith.constant 0 : index
      %c0_24 = arith.constant 0 : index
      %c0_25 = arith.constant 0 : index
      %26 = vector.load %arg7[%c0_23, %c0_24, %c0_25] : memref<2x16x128xf32, #tpu.memory_space<vmem>>, vector<2x16x128xf32>
      tpu.vector_store %arg7[%c0_23, %c0_24, %c0_25], %25 {strides = array<i32>} : memref<2x16x128xf32, #tpu.memory_space<vmem>>, vector<2x16x128xf32>,
    } else {
    }
    %c0 = arith.constant 0 : index
    %c0_1 = arith.constant 0 : index
    %3 = vector.load %arg3[%c0, %c0_1] : memref<16x128xf32, #tpu.memory_space<vmem>>, vector<16x128xf32>
    %c0_2 = arith.constant 0 : index
    %c0_3 = arith.constant 0 : index
    %c0_4 = arith.constant 0 : index
    %4 = vector.load %arg7[%c0_2, %c0_3, %c0_4] : memref<2x16x128xf32, #tpu.memory_space<vmem>>, vector<1x16x128xf32>
    %5 = vector.shape_cast %4 : vector<1x16x128xf32> to vector<16x128xf32>
    %c0_5 = arith.constant 0 : index
    %c0_6 = arith.constant 0 : index
    %c0_7 = arith.constant 0 : index
    %6 = vector.load %arg4[%c0_5, %c0_6, %c0_7] : memref<2x128x128xf32, #tpu.memory_space<vmem>>, vector<1x128x128xf32>
    %7 = vector.shape_cast %6 : vector<1x128x128xf32> to vector<128x128xf32>
    %cst = arith.constant dense<0.000000e+00> : vector<16x128xf32>
    %8 = tpu.matmul %3, %7, %cst {dimension_numbers = #tpu.dot_dimension_numbers<[1], [0], [0], [1], [0, 0, 1, 1], [], []>} : vector<16x128xf32>, vector<128x128xf32>, vector<16x128xf32> -> vector<16x128xf32>
    %9 = arith.addf %5, %8 : vector<16x128xf32>
    %c0_8 = arith.constant 0 : index
    %c0_9 = arith.constant 0 : index
    %c0_10 = arith.constant 0 : index
    %10 = vector.load %arg7[%c0_8, %c0_9, %c0_10] : memref<2x16x128xf32, #tpu.memory_space<vmem>>, vector<1x16x128xf32>
    %11 = vector.shape_cast %10 : vector<1x16x128xf32> to vector<16x128xf32>
    %12 = vector.shape_cast %9 : vector<16x128xf32> to vector<1x16x128xf32>
    tpu.vector_store %arg7[%c0_8, %c0_9, %c0_10], %12 {strides = array<i32>} : memref<2x16x128xf32, #tpu.memory_space<vmem>>, vector<1x16x128xf32>,
    %c1 = arith.constant 1 : index
    %c0_11 = arith.constant 0 : index
    %c0_12 = arith.constant 0 : index
    %13 = vector.load %arg7[%c1, %c0_11, %c0_12] : memref<2x16x128xf32, #tpu.memory_space<vmem>>, vector<1x16x128xf32>
    %14 = vector.shape_cast %13 : vector<1x16x128xf32> to vector<16x128xf32>
    %c1_13 = arith.constant 1 : index
    %c0_14 = arith.constant 0 : index
    %c0_15 = arith.constant 0 : index
    %15 = vector.load %arg4[%c1_13, %c0_14, %c0_15] : memref<2x128x128xf32, #tpu.memory_space<vmem>>, vector<1x128x128xf32>
    %16 = vector.shape_cast %15 : vector<1x128x128xf32> to vector<128x128xf32>
    %cst_16 = arith.constant dense<0.000000e+00> : vector<16x128xf32>
    %17 = tpu.matmul %3, %16, %cst_16 {dimension_numbers = #tpu.dot_dimension_numbers<[1], [0], [0], [1], [0, 0, 1, 1], [], []>} : vector<16x128xf32>, vector<128x128xf32>, vector<16x128xf32> -> vector<16x128xf32>
    %18 = arith.addf %14, %17 : vector<16x128xf32>
    %c1_17 = arith.constant 1 : index
    %c0_18 = arith.constant 0 : index
    %c0_19 = arith.constant 0 : index
    %19 = vector.load %arg7[%c1_17, %c0_18, %c0_19] : memref<2x16x128xf32, #tpu.memory_space<vmem>>, vector<1x16x128xf32>
    %20 = vector.shape_cast %19 : vector<1x16x128xf32> to vector<16x128xf32>
    %21 = vector.shape_cast %18 : vector<16x128xf32> to vector<1x16x128xf32>
    tpu.vector_store %arg7[%c1_17, %c0_18, %c0_19], %21 {strides = array<i32>} : memref<2x16x128xf32, #tpu.memory_space<vmem>>, vector<1x16x128xf32>,
    %c0_i32_20 = arith.constant 0 : i32
    %22 = arith.cmpi eq, %arg2, %c0_i32_20 : i32
    %23 = arith.extui %22 : i1 to i32
    %c0_i32_21 = arith.constant 0 : i32
    %24 = arith.cmpi ne, %23, %c0_i32_21 : i32
    scf.if %24 {
      %c0_22 = arith.constant 0 : index
      %c0_23 = arith.constant 0 : index
      %25 = vector.load %arg5[%c0_22, %c0_23] : memref<2x128xf32, #tpu.memory_space<vmem>>, vector<2x128xf32>
      %c0_24 = arith.constant 0 : index
      %c0_25 = arith.constant 0 : index
      %c0_26 = arith.constant 0 : index
      %26 = vector.load %arg7[%c0_24, %c0_25, %c0_26] : memref<2x16x128xf32, #tpu.memory_space<vmem>>, vector<1x16x128xf32>
      %27 = vector.shape_cast %26 : vector<1x16x128xf32> to vector<16x128xf32>
      %28 = vector.extract_strided_slice %25 {offsets = [0, 0], sizes = [1, 128], strides = [1, 1]} : vector<2x128xf32> to vector<1x128xf32>
      %29 = vector.broadcast %28 : vector<1x128xf32> to vector<16x128xf32>
      %30 = arith.addf %27, %29 : vector<16x128xf32>
      %c1_27 = arith.constant 1 : index
      %c0_28 = arith.constant 0 : index
      %c0_29 = arith.constant 0 : index
      %31 = vector.load %arg7[%c1_27, %c0_28, %c0_29] : memref<2x16x128xf32, #tpu.memory_space<vmem>>, vector<1x16x128xf32>
      %32 = vector.shape_cast %31 : vector<1x16x128xf32> to vector<16x128xf32>
      %33 = vector.extract_strided_slice %25 {offsets = [1, 0], sizes = [1, 128], strides = [1, 1]} : vector<2x128xf32> to vector<1x128xf32>
      %34 = vector.broadcast %33 : vector<1x128xf32> to vector<16x128xf32>
      %35 = arith.addf %32, %34 : vector<16x128xf32>
      %36 = arith.addf %30, %35 : vector<16x128xf32>
      %c0_30 = arith.constant 0 : index
      %c0_31 = arith.constant 0 : index
      %37 = vector.load %arg6[%c0_30, %c0_31] : memref<16x128xf32, #tpu.memory_space<vmem>>, vector<16x128xf32>
      tpu.vector_store %arg6[%c0_30, %c0_31], %36 {strides = array<i32>} : memref<16x128xf32, #tpu.memory_space<vmem>>, vector<16x128xf32>,
    } else {
    }
    return
  }
  func.func @transform_0(%arg0: i32, %arg1: i32, %arg2: i32) -> (i32, i32) {
    %c0_i32 = arith.constant 0 : i32
    return %arg0, %arg2 : i32, i32
  }
  func.func @transform_1(%arg0: i32, %arg1: i32, %arg2: i32) -> (i32, i32, i32) {
    %c0_i32 = arith.constant 0 : i32
    %c0_i32_0 = arith.constant 0 : i32
    return %c0_i32, %arg2, %arg1 : i32, i32, i32
  }
  func.func @transform_2(%arg0: i32, %arg1: i32, %arg2: i32) -> (i32, i32) {
    %c0_i32 = arith.constant 0 : i32
    %c0_i32_0 = arith.constant 0 : i32
    return %c0_i32, %arg1 : i32, i32
  }
  func.func @transform_3(%arg0: i32, %arg1: i32, %arg2: i32) -> (i32, i32) {
    %c0_i32 = arith.constant 0 : i32
    return %arg0, %arg1 : i32, i32
  }
}

</mosaic_0001>

<llo_original>
// kernel: tpu_custom_call.1
$region0: #{tpu_custom_call.1}
  #allocation0 [shape = 'u32[]', space=smem, size = 0x4, offset = 0x4, fixed_abs, tag = 'smem constant byte address 0x4 - core index']
  #allocation1 [shape = 'u32[144,128]{1,0:T(1,128)}', space=vmem, size = 0x12000, scoped, tag = 'internal scratch']
  #allocation2 [shape = 'f32[2,16,128]{2,1,0:T(8,128)}', space=vmem, size = 0x4000, scoped, tag = 'scratch operand']
  %s0 = inlined_call_operand.hbm [shape: f32[16,128], index: 0, kind: input, shape index: {}]
  %s1 = inlined_call_operand.hbm [shape: f32[2,128,128], index: 1, kind: input, shape index: {}]
  %s2 = inlined_call_operand.vmem [shape: f32[2,128], index: 2, kind: input, shape index: {}]
  %s3 = inlined_call_operand.hbm [shape: f32[16,128], index: 3, kind: output, shape index: {}]
  %s4 = sld [smem:[#allocation0]]
  $region38: #{tpu_custom_call.1} parent=0
    _
  %s6 = ssub.s32 1, %s4
  %s7 = scalar_select 0, %s6, %s4
  $region1: #{tpu_custom_call.1} parent=0
    #allocation3 [shape = 'u8[8192]{0}', space=vmem, size = 0x2000, scoped, tag = 'input window, operand 0, single buffered']
    #allocation4 [shape = 's32[1]{0}', space=sflag, size = 0x4, scoped, tag = 'scoped memory for tpu_custom_call.1']
    #allocation5 [shape = 's32[1]{0}', space=sflag, size = 0x4, scoped, tag = 'scoped memory for tpu_custom_call.1']
    #allocation6 [shape = 'u8[131072]{0}', space=vmem, size = 0x20000, scoped, tag = 'input window, operand 1, single buffered']
    #allocation7 [shape = 's32[1]{0}', space=sflag, size = 0x4, scoped, tag = 'scoped memory for tpu_custom_call.1']
    #allocation8 [shape = 'u8[8192]{0}', space=vmem, size = 0x2000, scoped, tag = 'output window, operand 0, single buffered']
    %8 = vsyncpa [#allocation4], 0
    %9 = vsyncpa [#allocation7], 0
    %10 = vsyncpa [#allocation5], 0
    // Predicated region
    $region2: #{tpu_custom_call.1} parent=1 // pred_check
      _
    $region3: #{tpu_custom_call.1} parent=1 // pred_check_branch
      %12 = sbr.rel (0) target = $region5
    $region4: #{tpu_custom_call.1} parent=1 // pred_region
      %s14 = ssub.s32 256, 256
      %15 = vsyncadd [#allocation4], %s14
      %s16 = sshll.u32 [#allocation3], 4
      %s17 = int_to_ptr.vmem [resolvable:$true] %s16
      %22 = dma.hbm_to_vmem [thread:$0]  %s0, 256, %s17, [#allocation4], 128, 128, 8
    $region5: #{tpu_custom_call.1} parent=1 // pred_fallthru
      _
    // Predicated region
    $region6: #{tpu_custom_call.1} parent=1 // pred_check
      _
    $region7: #{tpu_custom_call.1} parent=1 // pred_check_branch
      %24 = sbr.rel (0) target = $region9
    $region8: #{tpu_custom_call.1} parent=1 // pred_region
      %s26 = ssub.s32 4096, 4096
      %27 = vsyncadd [#allocation7], %s26
      %s28 = sshll.u32 [#allocation6], 4
      %s29 = int_to_ptr.vmem [resolvable:$true] %s28
      %34 = dma.hbm_to_vmem [thread:$0]  %s1, 4096, %s29, [#allocation7], 128, 128, 8
    $region9: #{tpu_custom_call.1} parent=1 // pred_fallthru
      _
    // Predicated region
    $region10: #{tpu_custom_call.1} parent=1 // pred_check
      _
    $region11: #{tpu_custom_call.1} parent=1 // pred_check_branch
      %36 = sbr.rel (0) target = $region13
    $region12: #{tpu_custom_call.1} parent=1 // pred_region
      _
    $region13: #{tpu_custom_call.1} parent=1 // pred_fallthru
      _
    // Predicated region
    $region14: #{tpu_custom_call.1} parent=1 // pred_check
      _
    $region15: #{tpu_custom_call.1} parent=1 // pred_check_branch
      %38 = sbr.rel (0) target = $region17
    $region16: #{tpu_custom_call.1} parent=1 // pred_region
      %39 = dma.done [#allocation4], 256
    $region17: #{tpu_custom_call.1} parent=1 // pred_fallthru
      _
    // Predicated region
    $region18: #{tpu_custom_call.1} parent=1 // pred_check
      _
    $region19: #{tpu_custom_call.1} parent=1 // pred_check_branch
      %41 = sbr.rel (0) target = $region21
    $region20: #{tpu_custom_call.1} parent=1 // pred_region
      %42 = dma.done [#allocation7], 4096
    $region21: #{tpu_custom_call.1} parent=1 // pred_fallthru
      _
    %p43 = scmp.eq.s32.totalorder 0, 0
    // Predicated region
    $region22: #{tpu_custom_call.1} parent=1 // pred_check
      %p44 = pneg %p43
    $region23: #{tpu_custom_call.1} parent=1 // pred_check_branch
      %46 = sbr.rel (%p44) target = $region25
    $region24: #{tpu_custom_call.1} parent=1 // pred_region
      %47 = vst [vmem:[#allocation2] sm:$0xff] 0.0
      %48 = vst [vmem:[#allocation2 + $0x8] sm:$0xff] 0.0
      %49 = vst [vmem:[#allocation2 + $0x10] sm:$0xff] 0.0
      %50 = vst [vmem:[#allocation2 + $0x18] sm:$0xff] 0.0
    $region25: #{tpu_custom_call.1} parent=1 // pred_fallthru
      _
    %v51 = vld [vmem:[#allocation3] sm:$0xff]
    %v52 = vld [vmem:[#allocation3 + $0x8] sm:$0xff]
    %v53 = vld [vmem:[#allocation2] sm:$0xff]
    %v54 = vld [vmem:[#allocation2 + $0x8] sm:$0xff]
    %v55 = vld [vmem:[#allocation6] sm:$0xff]
    %v56 = vld [vmem:[#allocation6 + $0x8] sm:$0xff]
    %v57 = vld [vmem:[#allocation6 + $0x10] sm:$0xff]
    %v58 = vld [vmem:[#allocation6 + $0x18] sm:$0xff]
    %v59 = vld [vmem:[#allocation6 + $0x20] sm:$0xff]
    %v60 = vld [vmem:[#allocation6 + $0x28] sm:$0xff]
    %v61 = vld [vmem:[#allocation6 + $0x30] sm:$0xff]
    %v62 = vld [vmem:[#allocation6 + $0x38] sm:$0xff]
    %v63 = vld [vmem:[#allocation6 + $0x40] sm:$0xff]
    %v64 = vld [vmem:[#allocation6 + $0x48] sm:$0xff]
    %v65 = vld [vmem:[#allocation6 + $0x50] sm:$0xff]
    %v66 = vld [vmem:[#allocation6 + $0x58] sm:$0xff]
    %v67 = vld [vmem:[#allocation6 + $0x60] sm:$0xff]
    %v68 = vld [vmem:[#allocation6 + $0x68] sm:$0xff]
    %v69 = vld [vmem:[#allocation6 + $0x70] sm:$0xff]
    %v70 = vld [vmem:[#allocation6 + $0x78] sm:$0xff]
    %71 = vmatprep.subr.mxu0 0.0
    %72 = vmatpush1.msra.mxu0 %v55
    %73 = vmatprep.subr.mxu0 0.0
    %74 = vmatpush1.msra.mxu0 %v56
    %75 = vmatprep.subr.mxu0 0.0
    %76 = vmatpush1.msra.mxu0 %v57
    %77 = vmatprep.subr.mxu0 0.0
    %78 = vmatpush1.msra.mxu0 %v58
    %79 = vmatprep.subr.mxu0 0.0
    %80 = vmatpush1.msra.mxu0 %v59
    %81 = vmatprep.subr.mxu0 0.0
    %82 = vmatpush1.msra.mxu0 %v60
    %83 = vmatprep.subr.mxu0 0.0
    %84 = vmatpush1.msra.mxu0 %v61
    %85 = vmatprep.subr.mxu0 0.0
    %86 = vmatpush1.msra.mxu0 %v62
    %87 = vmatprep.subr.mxu0 0.0
    %88 = vmatpush1.msra.mxu0 %v63
    %89 = vmatprep.subr.mxu0 0.0
    %90 = vmatpush1.msra.mxu0 %v64
    %91 = vmatprep.subr.mxu0 0.0
    %92 = vmatpush1.msra.mxu0 %v65
    %93 = vmatprep.subr.mxu0 0.0
    %94 = vmatpush1.msra.mxu0 %v66
    %95 = vmatprep.subr.mxu0 0.0
    %96 = vmatpush1.msra.mxu0 %v67
    %97 = vmatprep.subr.mxu0 0.0
    %98 = vmatpush1.msra.mxu0 %v68
    %99 = vmatprep.subr.mxu0 0.0
    %100 = vmatpush1.msra.mxu0 %v69
    %101 = vmatprep.subr.mxu0 0.0
    %102 = vmatpush1.msra.mxu0 %v70
    %103 = vmatprep.subr.mxu0 0.0
    %104 = vmatpush1.msra.mxu0 0.0
    %105 = vmatprep.subr.mxu0 0.0
    %106 = vmatpush1.msra.mxu0 0.0
    %107 = vmatprep.subr.mxu0 0.0
    %108 = vmatpush1.msra.mxu0 0.0
    %109 = vmatprep.subr.mxu0 0.0
    %110 = vmatpush1.msra.mxu0 0.0
    %111 = vmatprep.subr.mxu0 0.0
    %112 = vmatpush1.msra.mxu0 0.0
    %113 = vmatprep.subr.mxu0 0.0
    %114 = vmatpush1.msra.mxu0 0.0
    %115 = vmatprep.subr.mxu0 0.0
    %116 = vmatpush1.msra.mxu0 0.0
    %117 = vmatprep.subr.mxu0 0.0
    %118 = vmatpush1.msra.mxu0 0.0
    %119 = vmatprep.subr.mxu0 0.0
    %120 = vmatpush1.msra.mxu0 0.0
    %121 = vmatprep.subr.mxu0 0.0
    %122 = vmatpush1.msra.mxu0 0.0
    %123 = vmatprep.subr.mxu0 0.0
    %124 = vmatpush1.msra.mxu0 0.0
    %125 = vmatprep.subr.mxu0 0.0
    %126 = vmatpush1.msra.mxu0 0.0
    %127 = vmatprep.subr.mxu0 0.0
    %128 = vmatpush1.msra.mxu0 0.0
    %129 = vmatprep.subr.mxu0 0.0
    %130 = vmatpush1.msra.mxu0 0.0
    %131 = vmatprep.subr.mxu0 0.0
    %132 = vmatpush1.msra.mxu0 0.0
    %133 = vmatprep.subr.mxu0 0.0
    %134 = vmatpush1.msra.mxu0 0.0
    %135 = vmatprep.mubr.f32.mxu0 0.0
    %136 = vmatmul.mubr.f32.gmra.mrb[0].mxu0 %v51
    %v137 = vpop.f32.mrb[0].mxu0
    %v138 = vadd.f32 0.0, %v137
    %v139 = vpop.f32.mrb[0].mxu0
    %140 = vmatprep.mubr.f32.mxu0 0.0
    %141 = vmatmul.mubr.f32.gmra.mrb[0].mxu0 %v52
    %v142 = vpop.f32.mrb[0].mxu0
    %v143 = vadd.f32 0.0, %v142
    %v144 = vpop.f32.mrb[0].mxu0
    %145 = vdwg.mxu0
    %v146 = vadd.f32 %v53, %v138
    %v147 = vadd.f32 %v54, %v143
    %148 = vst [vmem:[#allocation2] sm:$0xff] %v146
    %149 = vst [vmem:[#allocation2 + $0x8] sm:$0xff] %v147
    %s150 = scalar_lea.vmem [#allocation2], 16
    %v151 = vld [vmem:[%s150] sm:$0xff]
    %v152 = vld [vmem:[%s150 + $0x8] sm:$0xff]
    %s153 = scalar_lea.vmem [#allocation6], 128
    %v154 = vld [vmem:[%s153] sm:$0xff]
    %v155 = vld [vmem:[%s153 + $0x8] sm:$0xff]
    %v156 = vld [vmem:[%s153 + $0x10] sm:$0xff]
    %v157 = vld [vmem:[%s153 + $0x18] sm:$0xff]
    %v158 = vld [vmem:[%s153 + $0x20] sm:$0xff]
    %v159 = vld [vmem:[%s153 + $0x28] sm:$0xff]
    %v160 = vld [vmem:[%s153 + $0x30] sm:$0xff]
    %v161 = vld [vmem:[%s153 + $0x38] sm:$0xff]
    %v162 = vld [vmem:[%s153 + $0x40] sm:$0xff]
    %v163 = vld [vmem:[%s153 + $0x48] sm:$0xff]
    %v164 = vld [vmem:[%s153 + $0x50] sm:$0xff]
    %v165 = vld [vmem:[%s153 + $0x58] sm:$0xff]
    %v166 = vld [vmem:[%s153 + $0x60] sm:$0xff]
    %v167 = vld [vmem:[%s153 + $0x68] sm:$0xff]
    %v168 = vld [vmem:[%s153 + $0x70] sm:$0xff]
    %v169 = vld [vmem:[%s153 + $0x78] sm:$0xff]
    %170 = vmatprep.subr.mxu0 0.0
    %171 = vmatpush1.msra.mxu0 %v154
    %172 = vmatprep.subr.mxu0 0.0
    %173 = vmatpush1.msra.mxu0 %v155
    %174 = vmatprep.subr.mxu0 0.0
    %175 = vmatpush1.msra.mxu0 %v156
    %176 = vmatprep.subr.mxu0 0.0
    %177 = vmatpush1.msra.mxu0 %v157
    %178 = vmatprep.subr.mxu0 0.0
    %179 = vmatpush1.msra.mxu0 %v158
    %180 = vmatprep.subr.mxu0 0.0
    %181 = vmatpush1.msra.mxu0 %v159
    %182 = vmatprep.subr.mxu0 0.0
    %183 = vmatpush1.msra.mxu0 %v160
    %184 = vmatprep.subr.mxu0 0.0
    %185 = vmatpush1.msra.mxu0 %v161
    %186 = vmatprep.subr.mxu0 0.0
    %187 = vmatpush1.msra.mxu0 %v162
    %188 = vmatprep.subr.mxu0 0.0
    %189 = vmatpush1.msra.mxu0 %v163
    %190 = vmatprep.subr.mxu0 0.0
    %191 = vmatpush1.msra.mxu0 %v164
    %192 = vmatprep.subr.mxu0 0.0
    %193 = vmatpush1.msra.mxu0 %v165
    %194 = vmatprep.subr.mxu0 0.0
    %195 = vmatpush1.msra.mxu0 %v166
    %196 = vmatprep.subr.mxu0 0.0
    %197 = vmatpush1.msra.mxu0 %v167
    %198 = vmatprep.subr.mxu0 0.0
    %199 = vmatpush1.msra.mxu0 %v168
    %200 = vmatprep.subr.mxu0 0.0
    %201 = vmatpush1.msra.mxu0 %v169
    %202 = vmatprep.subr.mxu0 0.0
    %203 = vmatpush1.msra.mxu0 0.0
    %204 = vmatprep.subr.mxu0 0.0
    %205 = vmatpush1.msra.mxu0 0.0
    %206 = vmatprep.subr.mxu0 0.0
    %207 = vmatpush1.msra.mxu0 0.0
    %208 = vmatprep.subr.mxu0 0.0
    %209 = vmatpush1.msra.mxu0 0.0
    %210 = vmatprep.subr.mxu0 0.0
    %211 = vmatpush1.msra.mxu0 0.0
    %212 = vmatprep.subr.mxu0 0.0
    %213 = vmatpush1.msra.mxu0 0.0
    %214 = vmatprep.subr.mxu0 0.0
    %215 = vmatpush1.msra.mxu0 0.0
    %216 = vmatprep.subr.mxu0 0.0
    %217 = vmatpush1.msra.mxu0 0.0
    %218 = vmatprep.subr.mxu0 0.0
    %219 = vmatpush1.msra.mxu0 0.0
    %220 = vmatprep.subr.mxu0 0.0
    %221 = vmatpush1.msra.mxu0 0.0
    %222 = vmatprep.subr.mxu0 0.0
    %223 = vmatpush1.msra.mxu0 0.0
    %224 = vmatprep.subr.mxu0 0.0
    %225 = vmatpush1.msra.mxu0 0.0
    %226 = vmatprep.subr.mxu0 0.0
    %227 = vmatpush1.msra.mxu0 0.0
    %228 = vmatprep.subr.mxu0 0.0
    %229 = vmatpush1.msra.mxu0 0.0
    %230 = vmatprep.subr.mxu0 0.0
    %231 = vmatpush1.msra.mxu0 0.0
    %232 = vmatprep.subr.mxu0 0.0
    %233 = vmatpush1.msra.mxu0 0.0
    %234 = vmatprep.mubr.f32.mxu0 0.0
    %235 = vmatmul.mubr.f32.gmra.mrb[0].mxu0 %v51
    %v236 = vpop.f32.mrb[0].mxu0
    %v237 = vadd.f32 0.0, %v236
    %v238 = vpop.f32.mrb[0].mxu0
    %239 = vmatprep.mubr.f32.mxu0 0.0
    %240 = vmatmul.mubr.f32.gmra.mrb[0].mxu0 %v52
    %v241 = vpop.f32.mrb[0].mxu0
    %v242 = vadd.f32 0.0, %v241
    %v243 = vpop.f32.mrb[0].mxu0
    %244 = vdwg.mxu0
    %v245 = vadd.f32 %v151, %v237
    %v246 = vadd.f32 %v152, %v242
    %247 = vst [vmem:[%s150] sm:$0xff] %v245
    %248 = vst [vmem:[%s150 + $0x8] sm:$0xff] %v246
    // Predicated region
    $region26: #{tpu_custom_call.1} parent=1 // pred_check
      %p249 = pneg %p43
    $region27: #{tpu_custom_call.1} parent=1 // pred_check_branch
      %251 = sbr.rel (%p249) target = $region29
    $region28: #{tpu_custom_call.1} parent=1 // pred_region
      %v252 = vld [vmem:[%s2] sm:$0x3]
      %v253 = vld [vmem:[#allocation2] sm:$0xff]
      %v254 = vld [vmem:[#allocation2 + $0x8] sm:$0xff]
      %v255 = vlaneseq
      %v256 = vshrl.u32 %v255, 7
      %v257 = vsub.s32 0, %v256
      %v258 = vrot.slane %v252, %v257
      %v259 = vadd.f32 %v253, %v258
      %v260 = vadd.f32 %v254, %v258
      %v261 = vld [vmem:[%s150] sm:$0xff]
      %v262 = vld [vmem:[%s150 + $0x8] sm:$0xff]
      %v263 = vlaneseq
      %v264 = vshrl.u32 %v263, 7
      %v265 = vsub.s32 1, %v264
      %v266 = vrot.slane %v252, %v265
      %v267 = vadd.f32 %v261, %v266
      %v268 = vadd.f32 %v262, %v266
      %v269 = vadd.f32 %v259, %v267
      %v270 = vadd.f32 %v260, %v268
      %271 = vst [vmem:[#allocation8] sm:$0xff] %v269
      %272 = vst [vmem:[#allocation8 + $0x8] sm:$0xff] %v270
    $region29: #{tpu_custom_call.1} parent=1 // pred_fallthru
      _
    // Predicated region
    $region30: #{tpu_custom_call.1} parent=1 // pred_check
      _
    $region31: #{tpu_custom_call.1} parent=1 // pred_check_branch
      %274 = sbr.rel (0) target = $region33
    $region32: #{tpu_custom_call.1} parent=1 // pred_region
      %s276 = ssub.s32 256, 256
      %277 = vsyncadd [#allocation5], %s276
      %s278 = sshll.u32 [#allocation8], 4
      %s279 = int_to_ptr.vmem [resolvable:$true] %s278
      %284 = dma.vmem_to_hbm [thread:$0]  %s279, 256, %s3, [#allocation5], 128, 128, 8
    $region33: #{tpu_custom_call.1} parent=1 // pred_fallthru
      _
    // Predicated region
    $region34: #{tpu_custom_call.1} parent=1 // pred_check
      _
    $region35: #{tpu_custom_call.1} parent=1 // pred_check_branch
      %286 = sbr.rel (0) target = $region37
    $region36: #{tpu_custom_call.1} parent=1 // pred_region
      %287 = dma.done [#allocation5], 256
    $region37: #{tpu_custom_call.1} parent=1 // pred_fallthru
      _
    %288 = vsyncpa [#allocation4], 1
    %289 = vsyncpa [#allocation7], 1
    %290 = vsyncpa [#allocation5], 1

</llo_original>
